<compile_context>
chip_gen: v6e
topology: v6e:2x2x1
jax: 0.10.0
libtpu: 0.0.40
codegen_flags: <defaults>
</compile_context>

<pallas_src>
import functools

import jax
import jax.numpy as jnp
from jax.experimental import pallas as pl
from jax.experimental.pallas import tpu as pltpu

LN_EPS = 1e-6
_INV_SQRT2 = 0.7071067811865475
_SQRT_2_OVER_PI = 0.7978845608028654


def _round_up(n, m):
    return ((n + m - 1) // m) * m


def _cdiv(a, b):
    return (a + b - 1) // b


def _device_vmem_capacity():
    # Trace-time hardware query; fall back to the smallest current per-TC VMEM
    # (v7x, 64 MiB) if the query is unavailable.
    try:
        return int(pltpu.get_tpu_info().vmem_capacity_bytes)
    except Exception:
        return 64 << 20


def _vmem_budget(D, tm, th, n_wbuf, wbytes, xbytes):
    """Approximate per-step VMEM footprint in bytes, with compiler headroom."""
    return (
        n_wbuf * 2 * D * th * wbytes      # W1 (D, th) + W2 (th, D) slabs
        + (3 * D + n_wbuf * th) * 4       # gamma, beta, b2, b1 tile(s)
        + 2 * tm * D * xbytes             # x tile, double-buffered
        + 2 * tm * D * xbytes             # out tile, double-buffered
        + tm * D * (wbytes + 4)           # xn stash + f32 accumulator scratch
        + tm * th * (4 + wbytes)          # hidden intermediate (f32) + MXU cast
        + (16 << 20)                      # headroom / slack
    )


def _ffn_kernel(x_ref, gamma_ref, beta_ref, w1_ref, b1_ref, w2_ref, b2_ref,
                o_ref, xn_scr, acc_scr, *, approximate_gelu):
    # Grid = (row tiles ["parallel"], hidden slabs ["arbitrary" reduction]).
    h_idx = pl.program_id(1)
    n_h = pl.num_programs(1)

    @pl.when(h_idx == 0)
    def _():
        # LayerNorm over the feature axis, fused stats (single pass over x).
        x = x_ref[...].astype(jnp.float32)
        mean = jnp.mean(x, axis=-1, keepdims=True)
        ex2 = jnp.mean(x * x, axis=-1, keepdims=True)
        var = jnp.maximum(ex2 - mean * mean, 0.0)
        xn = (x - mean) * jax.lax.rsqrt(var + LN_EPS)
        xn = xn * gamma_ref[...] + beta_ref[...]
        xn_scr[...] = xn.astype(xn_scr.dtype)
        acc_scr[...] = jnp.zeros_like(acc_scr)

    # Linear1 on this hidden slab (bf16 MXU operands, f32 accumulation).
    h = jnp.dot(xn_scr[...], w1_ref[...],
                preferred_element_type=jnp.float32) + b1_ref[...]
    if approximate_gelu:
        # tanh-GELU: transcendental lands on the (otherwise idle) EUP slot.
        h = 0.5 * h * (1.0 + jnp.tanh(_SQRT_2_OVER_PI * (h + 0.044715 * h * h * h)))
    else:
        # Exact erf-GELU (matches torch.nn.GELU()).
        h = 0.5 * h * (1.0 + jax.lax.erf(h * _INV_SQRT2))

    # Linear2 partial product for this hidden slab.
    acc_scr[...] += jnp.dot(h.astype(w2_ref.dtype), w2_ref[...],
                            preferred_element_type=jnp.float32)

    @pl.when(h_idx == n_h - 1)
    def _():
        # TODO(synk): Dropout is identity in eval mode; training-mode RNG masking not implemented.
        out = acc_scr[...] + b2_ref[...] + x_ref[...].astype(jnp.float32)
        o_ref[...] = out.astype(o_ref.dtype)


@functools.partial(jax.jit,
                   static_argnames=("tile_m", "tile_h", "mxu_dtype",
                                    "approximate_gelu"))
def position_wise_feed_forward(x, gamma, beta, w1, b1, w2, b2, *,
                               tile_m=None, tile_h=None,
                               mxu_dtype=jnp.bfloat16,
                               approximate_gelu=False):
    B, S, D = x.shape
    H = w1.shape[1]
    rows = B * S

    wbytes = jnp.dtype(mxu_dtype).itemsize
    xbytes = jnp.dtype(x.dtype).itemsize
    vmem_cap = _device_vmem_capacity()

    # ---- Row tile: multiple of 128 (MXU-aligned), padded for tiny inputs;
    # ensure >= 2 row steps when rows allow so both v7x TCs get work. ----
    if tile_m is None:
        tile_m = 512 if vmem_cap >= (96 << 20) else 256
    if rows <= 128:
        tm = 128
    else:
        tm = min(int(tile_m), _round_up(rows, 128))
        tm = min(tm, _round_up(_cdiv(rows, 2), 128))
        tm = max(128, (tm // 128) * 128)
    padded_rows = _round_up(rows, tm)
    grid_m = padded_rows // tm

    # ---- Hidden tile: resident weights if they fit the device VMEM budget,
    # otherwise stream the largest multiple-of-128 divisor of H that fits. ----
    if tile_h is None:
        if _vmem_budget(D, tm, H, 1, wbytes, xbytes) <= int(0.75 * vmem_cap):
            tile_h = H
        else:
            tile_h = 128 if H % 128 == 0 else H
            cand = (H // 128) * 128
            while cand >= 128:
                if (H % cand == 0 and
                        _vmem_budget(D, tm, cand, 2, wbytes, xbytes)
                        <= int(0.75 * vmem_cap)):
                    tile_h = cand
                    break
                cand -= 128
    th = int(tile_h)
    if H % th != 0:
        raise ValueError(f"tile_h={th} must divide dim_hid={H}")
    n_h = H // th
    n_wbuf = 1 if n_h == 1 else 2

    # ---- Prepare operands (MXU weights in bf16; LN/bias params in f32). ----
    x2d = x.reshape(rows, D)
    if padded_rows != rows:
        x2d = jnp.pad(x2d, ((0, padded_rows - rows), (0, 0)))

    gamma2 = gamma.reshape(1, D).astype(jnp.float32)
    beta2 = beta.reshape(1, D).astype(jnp.float32)
    b1_2 = b1.reshape(1, H).astype(jnp.float32)
    b2_2 = b2.reshape(1, D).astype(jnp.float32)
    w1_c = w1.astype(mxu_dtype)
    w2_c = w2.astype(mxu_dtype)

    # Device-aware scoped-VMEM limit (never above ~85% of physical VMEM).
    vmem_limit = int(min(int(0.85 * vmem_cap),
                         _vmem_budget(D, tm, th, n_wbuf, wbytes, xbytes)))

    def _const_spec(shape):
        # Constant across the whole grid -> single-buffered.
        return pl.BlockSpec(shape, lambda i, h: (0, 0),
                            pipeline_mode=pl.Buffered(buffer_count=1))

    if n_h == 1:
        # Resident weights: single-buffered (no re-fetch across the grid).
        w1_spec = pl.BlockSpec((D, th), lambda i, h: (0, 0),
                               pipeline_mode=pl.Buffered(buffer_count=1))
        b1_spec = pl.BlockSpec((1, th), lambda i, h: (0, 0),
                               pipeline_mode=pl.Buffered(buffer_count=1))
        w2_spec = pl.BlockSpec((th, D), lambda i, h: (0, 0),
                               pipeline_mode=pl.Buffered(buffer_count=1))
    else:
        # Streamed hidden slabs: default double buffering hides the DMA.
        w1_spec = pl.BlockSpec((D, th), lambda i, h: (0, h))
        b1_spec = pl.BlockSpec((1, th), lambda i, h: (0, h))
        w2_spec = pl.BlockSpec((th, D), lambda i, h: (h, 0))

    kernel = functools.partial(_ffn_kernel, approximate_gelu=approximate_gelu)

    out2d = pl.pallas_call(
        kernel,
        out_shape=jax.ShapeDtypeStruct((padded_rows, D), x.dtype),
        grid_spec=pltpu.PrefetchScalarGridSpec(
            num_scalar_prefetch=0,
            grid=(grid_m, n_h),
            in_specs=[
                pl.BlockSpec((tm, D), lambda i, h: (i, 0)),   # x rows tile
                _const_spec((1, D)),                          # gamma
                _const_spec((1, D)),                          # beta
                w1_spec,                                      # W1 slab
                b1_spec,                                      # b1 slab
                w2_spec,                                      # W2 slab
                _const_spec((1, D)),                          # b2
            ],
            out_specs=pl.BlockSpec((tm, D), lambda i, h: (i, 0)),
            scratch_shapes=[
                pltpu.VMEM((tm, D), mxu_dtype),     # LayerNorm output stash
                pltpu.VMEM((tm, D), jnp.float32),   # Linear2 f32 accumulator
            ],
        ),
        compiler_params=pltpu.CompilerParams(
            dimension_semantics=("parallel", "arbitrary"),
            vmem_limit_bytes=vmem_limit,
        ),
    )(x2d, gamma2, beta2, w1_c, b1_2, w2_c, b2_2)

    return out2d[:rows].reshape(B, S, D)


def init_params(key, dim_in, dim_hid, dtype=jnp.float32):
    """Parameter init mirroring the module's shapes.

    nn.LayerNorm(dim_in): gamma=(dim_in,), beta=(dim_in,)
    nn.Linear(dim_in, dim_hid): W1 stored as (dim_in, dim_hid) for x @ W1, b1=(dim_hid,)
    nn.Linear(dim_hid, dim_in): W2 stored as (dim_hid, dim_in), b2=(dim_in,)
    """
    k1, k2, k3, k4 = jax.random.split(key, 4)
    bound1 = 1.0 / jnp.sqrt(dim_in)
    bound2 = 1.0 / jnp.sqrt(dim_hid)
    gamma = jnp.ones((dim_in,), dtype)
    beta = jnp.zeros((dim_in,), dtype)
    w1 = jax.random.uniform(k1, (dim_in, dim_hid), dtype, -bound1, bound1)
    b1 = jax.random.uniform(k2, (dim_hid,), dtype, -bound1, bound1)
    w2 = jax.random.uniform(k3, (dim_hid, dim_in), dtype, -bound2, bound2)
    b2 = jax.random.uniform(k4, (dim_in,), dtype, -bound2, bound2)
    return gamma, beta, w1, b1, w2, b2


def _reference(x, gamma, beta, w1, b1, w2, b2):
    xf = x.astype(jnp.float32)
    mean = jnp.mean(xf, axis=-1, keepdims=True)
    var = jnp.mean((xf - mean) ** 2, axis=-1, keepdims=True)
    xn = (xf - mean) / jnp.sqrt(var + LN_EPS) * gamma + beta
    h = xn @ w1 + b1
    h = 0.5 * h * (1.0 + jax.lax.erf(h / jnp.sqrt(2.0)))
    out = h @ w2 + b2
    return (xf + out).astype(x.dtype)


if __name__ == "__main__":
    key = jax.random.PRNGKey(0)
    kx1, kx2, kx3, kp1, kp2 = jax.random.split(key, 5)

    # Case 1: small shape -> resident-weight path (single H tile).
    DIM_IN, DIM_HID = 32, 64
    params_small = init_params(kp1, DIM_IN, DIM_HID)
    x1 = jax.random.normal(kx1, (2, 8, DIM_IN), jnp.float32)
    y1 = jax.block_until_ready(position_wise_feed_forward(x1, *params_small))
    r1 = _reference(x1, *params_small)
    assert y1.shape == x1.shape and y1.dtype == x1.dtype
    assert jnp.allclose(y1, r1, atol=5e-2, rtol=5e-2), "mismatch vs reference (case 1)"

    # Case 2: ragged row count (exercises the row-padding path).
    x2 = jax.random.normal(kx2, (3, 5, DIM_IN), jnp.float32)
    y2 = jax.block_until_ready(position_wise_feed_forward(x2, *params_small))
    r2 = _reference(x2, *params_small)
    assert y2.shape == x2.shape and y2.dtype == x2.dtype
    assert jnp.allclose(y2, r2, atol=5e-2, rtol=5e-2), "mismatch vs reference (case 2)"

    # Case 3: force the H-tiled (streamed-weight, accumulator) path.
    D3, H3 = 128, 256
    params_big = init_params(kp2, D3, H3)
    x3 = jax.random.normal(kx3, (2, 64, D3), jnp.float32)
    y3 = jax.block_until_ready(
        position_wise_feed_forward(x3, *params_big, tile_h=128))
    r3 = _reference(x3, *params_big)
    assert y3.shape == x3.shape and y3.dtype == x3.dtype
    assert jnp.allclose(y3, r3, atol=5e-2, rtol=5e-2), "mismatch vs reference (case 3)"

    print("KERNEL_OK")
</pallas_src>

<mosaic_0001>
module attributes {stable_mosaic.version = 11 : i64} {
  func.func @_ffn_kernel(%arg0: i32, %arg1: i32, %arg2: memref<128x32xf32, #tpu.memory_space<vmem>>, %arg3: memref<1x32xf32, #tpu.memory_space<vmem>>, %arg4: memref<1x32xf32, #tpu.memory_space<vmem>>, %arg5: memref<32x64xbf16, #tpu.memory_space<vmem>>, %arg6: memref<1x64xf32, #tpu.memory_space<vmem>>, %arg7: memref<64x32xbf16, #tpu.memory_space<vmem>>, %arg8: memref<1x32xf32, #tpu.memory_space<vmem>>, %arg9: memref<128x32xf32, #tpu.memory_space<vmem>>, %arg10: memref<128x32xbf16, #tpu.memory_space<vmem>>, %arg11: memref<128x32xf32, #tpu.memory_space<vmem>>) attributes {dimension_semantics = [#tpu.dimension_semantics<parallel>, #tpu.dimension_semantics<arbitrary>], iteration_bounds = array<i64: 1, 1>, scalar_prefetch = 0 : i64, scratch_operands = 2 : i64, tpu.core_type = #tpu.core_type<tc>, window_params = [{transform_indices = @transform_0, window_bounds = array<i64: 128, 32>}, {pipeline_mode = #tpu.pipeline_mode<synchronous>, transform_indices = @transform_1, window_bounds = array<i64: 1, 32>}, {pipeline_mode = #tpu.pipeline_mode<synchronous>, transform_indices = @transform_2, window_bounds = array<i64: 1, 32>}, {pipeline_mode = #tpu.pipeline_mode<synchronous>, transform_indices = @transform_3, window_bounds = array<i64: 32, 64>}, {pipeline_mode = #tpu.pipeline_mode<synchronous>, transform_indices = @transform_4, window_bounds = array<i64: 1, 64>}, {pipeline_mode = #tpu.pipeline_mode<synchronous>, transform_indices = @transform_5, window_bounds = array<i64: 64, 32>}, {pipeline_mode = #tpu.pipeline_mode<synchronous>, transform_indices = @transform_6, window_bounds = array<i64: 1, 32>}, {transform_indices = @transform_7, window_bounds = array<i64: 128, 32>}]} {
    %c0_i32 = arith.constant 0 : i32
    %0 = arith.cmpi eq, %arg1, %c0_i32 : i32
    %1 = arith.extui %0 : i1 to i32
    %c0_i32_0 = arith.constant 0 : i32
    %2 = arith.cmpi ne, %1, %c0_i32_0 : i32
    scf.if %2 {
      %c0_18 = arith.constant 0 : index
      %c0_19 = arith.constant 0 : index
      %26 = vector.load %arg2[%c0_18, %c0_19] : memref<128x32xf32, #tpu.memory_space<vmem>>, vector<128x32xf32>
      %cst_20 = arith.constant dense<0.000000e+00> : vector<128xf32>
      %27 = vector.multi_reduction <add>, %26, %cst_20 [1] : vector<128x32xf32> to vector<128xf32>
      %28 = vector.shape_cast %27 : vector<128xf32> to vector<128x1xf32>
      %cst_21 = arith.constant 3.200000e+01 : f32
      %29 = vector.broadcast %cst_21 : f32 to vector<128x1xf32>
      %30 = arith.divf %28, %29 : vector<128x1xf32>
      %31 = arith.mulf %26, %26 : vector<128x32xf32>
      %cst_22 = arith.constant dense<0.000000e+00> : vector<128xf32>
      %32 = vector.multi_reduction <add>, %31, %cst_22 [1] : vector<128x32xf32> to vector<128xf32>
      %33 = vector.shape_cast %32 : vector<128xf32> to vector<128x1xf32>
      %cst_23 = arith.constant 3.200000e+01 : f32
      %34 = vector.broadcast %cst_23 : f32 to vector<128x1xf32>
      %35 = arith.divf %33, %34 : vector<128x1xf32>
      %36 = arith.mulf %30, %30 : vector<128x1xf32>
      %37 = arith.subf %35, %36 : vector<128x1xf32>
      %cst_24 = arith.constant 0.000000e+00 : f32
      %38 = vector.broadcast %cst_24 : f32 to vector<128x1xf32>
      %39 = arith.maximumf %37, %38 : vector<128x1xf32>
      %40 = vector.broadcast %30 : vector<128x1xf32> to vector<128x32xf32>
      %41 = arith.subf %26, %40 : vector<128x32xf32>
      %cst_25 = arith.constant 9.99999997E-7 : f32
      %42 = vector.broadcast %cst_25 : f32 to vector<128x1xf32>
      %43 = arith.addf %39, %42 : vector<128x1xf32>
      %44 = math.rsqrt %43 : vector<128x1xf32>
      %45 = vector.broadcast %44 : vector<128x1xf32> to vector<128x32xf32>
      %46 = arith.mulf %41, %45 : vector<128x32xf32>
      %c0_26 = arith.constant 0 : index
      %c0_27 = arith.constant 0 : index
      %47 = vector.load %arg3[%c0_26, %c0_27] : memref<1x32xf32, #tpu.memory_space<vmem>>, vector<1x32xf32>
      %48 = vector.broadcast %47 : vector<1x32xf32> to vector<128x32xf32>
      %49 = arith.mulf %46, %48 : vector<128x32xf32>
      %c0_28 = arith.constant 0 : index
      %c0_29 = arith.constant 0 : index
      %50 = vector.load %arg4[%c0_28, %c0_29] : memref<1x32xf32, #tpu.memory_space<vmem>>, vector<1x32xf32>
      %51 = vector.broadcast %50 : vector<1x32xf32> to vector<128x32xf32>
      %52 = arith.addf %49, %51 : vector<128x32xf32>
      %53 = arith.truncf %52 : vector<128x32xf32> to vector<128x32xbf16>
      %c0_30 = arith.constant 0 : index
      %c0_31 = arith.constant 0 : index
      %54 = vector.load %arg10[%c0_30, %c0_31] : memref<128x32xbf16, #tpu.memory_space<vmem>>, vector<128x32xbf16>
      tpu.vector_store %arg10[%c0_30, %c0_31], %53 {strides = array<i32>} : memref<128x32xbf16, #tpu.memory_space<vmem>>, vector<128x32xbf16>,
      %cst_32 = arith.constant 0.000000e+00 : f32
      %55 = vector.broadcast %cst_32 : f32 to vector<128x32xf32>
      %c0_33 = arith.constant 0 : index
      %c0_34 = arith.constant 0 : index
      %56 = vector.load %arg11[%c0_33, %c0_34] : memref<128x32xf32, #tpu.memory_space<vmem>>, vector<128x32xf32>
      tpu.vector_store %arg11[%c0_33, %c0_34], %55 {strides = array<i32>} : memref<128x32xf32, #tpu.memory_space<vmem>>, vector<128x32xf32>,
    } else {
    }
    %c0 = arith.constant 0 : index
    %c0_1 = arith.constant 0 : index
    %3 = vector.load %arg10[%c0, %c0_1] : memref<128x32xbf16, #tpu.memory_space<vmem>>, vector<128x32xbf16>
    %c0_2 = arith.constant 0 : index
    %c0_3 = arith.constant 0 : index
    %4 = vector.load %arg5[%c0_2, %c0_3] : memref<32x64xbf16, #tpu.memory_space<vmem>>, vector<32x64xbf16>
    %cst = arith.constant dense<0.000000e+00> : vector<128x64xf32>
    %5 = tpu.matmul %3, %4, %cst {dimension_numbers = #tpu.dot_dimension_numbers<[1], [0], [0], [1], [0, 0, 1, 1], [], []>} : vector<128x32xbf16>, vector<32x64xbf16>, vector<128x64xf32> -> vector<128x64xf32>
    %c0_4 = arith.constant 0 : index
    %c0_5 = arith.constant 0 : index
    %6 = vector.load %arg6[%c0_4, %c0_5] : memref<1x64xf32, #tpu.memory_space<vmem>>, vector<1x64xf32>
    %7 = vector.broadcast %6 : vector<1x64xf32> to vector<128x64xf32>
    %8 = arith.addf %5, %7 : vector<128x64xf32>
    %cst_6 = arith.constant 5.000000e-01 : f32
    %9 = vector.broadcast %cst_6 : f32 to vector<128x64xf32>
    %10 = arith.mulf %9, %8 : vector<128x64xf32>
    %cst_7 = arith.constant 0.707106769 : f32
    %11 = vector.broadcast %cst_7 : f32 to vector<128x64xf32>
    %12 = arith.mulf %8, %11 : vector<128x64xf32>
    %13 = math.erf %12 : vector<128x64xf32>
    %cst_8 = arith.constant 1.000000e+00 : f32
    %14 = vector.broadcast %cst_8 : f32 to vector<128x64xf32>
    %15 = arith.addf %14, %13 : vector<128x64xf32>
    %16 = arith.mulf %10, %15 : vector<128x64xf32>
    %c0_9 = arith.constant 0 : index
    %c0_10 = arith.constant 0 : index
    %17 = vector.load %arg11[%c0_9, %c0_10] : memref<128x32xf32, #tpu.memory_space<vmem>>, vector<128x32xf32>
    %18 = arith.truncf %16 : vector<128x64xf32> to vector<128x64xbf16>
    %c0_11 = arith.constant 0 : index
    %c0_12 = arith.constant 0 : index
    %19 = vector.load %arg7[%c0_11, %c0_12] : memref<64x32xbf16, #tpu.memory_space<vmem>>, vector<64x32xbf16>
    %cst_13 = arith.constant dense<0.000000e+00> : vector<128x32xf32>
    %20 = tpu.matmul %18, %19, %cst_13 {dimension_numbers = #tpu.dot_dimension_numbers<[1], [0], [0], [1], [0, 0, 1, 1], [], []>} : vector<128x64xbf16>, vector<64x32xbf16>, vector<128x32xf32> -> vector<128x32xf32>
    %21 = arith.addf %17, %20 : vector<128x32xf32>
    %c0_14 = arith.constant 0 : index
    %c0_15 = arith.constant 0 : index
    %22 = vector.load %arg11[%c0_14, %c0_15] : memref<128x32xf32, #tpu.memory_space<vmem>>, vector<128x32xf32>
    tpu.vector_store %arg11[%c0_14, %c0_15], %21 {strides = array<i32>} : memref<128x32xf32, #tpu.memory_space<vmem>>, vector<128x32xf32>,
    %c0_i32_16 = arith.constant 0 : i32
    %23 = arith.cmpi eq, %arg1, %c0_i32_16 : i32
    %24 = arith.extui %23 : i1 to i32
    %c0_i32_17 = arith.constant 0 : i32
    %25 = arith.cmpi ne, %24, %c0_i32_17 : i32
    scf.if %25 {
      %c0_18 = arith.constant 0 : index
      %c0_19 = arith.constant 0 : index
      %26 = vector.load %arg11[%c0_18, %c0_19] : memref<128x32xf32, #tpu.memory_space<vmem>>, vector<128x32xf32>
      %c0_20 = arith.constant 0 : index
      %c0_21 = arith.constant 0 : index
      %27 = vector.load %arg8[%c0_20, %c0_21] : memref<1x32xf32, #tpu.memory_space<vmem>>, vector<1x32xf32>
      %28 = vector.broadcast %27 : vector<1x32xf32> to vector<128x32xf32>
      %29 = arith.addf %26, %28 : vector<128x32xf32>
      %c0_22 = arith.constant 0 : index
      %c0_23 = arith.constant 0 : index
      %30 = vector.load %arg2[%c0_22, %c0_23] : memref<128x32xf32, #tpu.memory_space<vmem>>, vector<128x32xf32>
      %31 = arith.addf %29, %30 : vector<128x32xf32>
      %c0_24 = arith.constant 0 : index
      %c0_25 = arith.constant 0 : index
      %32 = vector.load %arg9[%c0_24, %c0_25] : memref<128x32xf32, #tpu.memory_space<vmem>>, vector<128x32xf32>
      tpu.vector_store %arg9[%c0_24, %c0_25], %31 {strides = array<i32>} : memref<128x32xf32, #tpu.memory_space<vmem>>, vector<128x32xf32>,
    } else {
    }
    return
  }
  func.func @transform_0(%arg0: i32, %arg1: i32) -> (i32, i32) {
    %c0_i32 = arith.constant 0 : i32
    %c0_i32_0 = arith.constant 0 : i32
    return %arg0, %c0_i32 : i32, i32
  }
  func.func @transform_1(%arg0: i32, %arg1: i32) -> (i32, i32) {
    %c0_i32 = arith.constant 0 : i32
    %c0_i32_0 = arith.constant 0 : i32
    %c0_i32_1 = arith.constant 0 : i32
    return %c0_i32, %c0_i32_0 : i32, i32
  }
  func.func @transform_2(%arg0: i32, %arg1: i32) -> (i32, i32) {
    %c0_i32 = arith.constant 0 : i32
    %c0_i32_0 = arith.constant 0 : i32
    %c0_i32_1 = arith.constant 0 : i32
    return %c0_i32, %c0_i32_0 : i32, i32
  }
  func.func @transform_3(%arg0: i32, %arg1: i32) -> (i32, i32) {
    %c0_i32 = arith.constant 0 : i32
    %c0_i32_0 = arith.constant 0 : i32
    %c0_i32_1 = arith.constant 0 : i32
    return %c0_i32, %c0_i32_0 : i32, i32
  }
  func.func @transform_4(%arg0: i32, %arg1: i32) -> (i32, i32) {
    %c0_i32 = arith.constant 0 : i32
    %c0_i32_0 = arith.constant 0 : i32
    %c0_i32_1 = arith.constant 0 : i32
    return %c0_i32, %c0_i32_0 : i32, i32
  }
  func.func @transform_5(%arg0: i32, %arg1: i32) -> (i32, i32) {
    %c0_i32 = arith.constant 0 : i32
    %c0_i32_0 = arith.constant 0 : i32
    %c0_i32_1 = arith.constant 0 : i32
    return %c0_i32, %c0_i32_0 : i32, i32
  }
  func.func @transform_6(%arg0: i32, %arg1: i32) -> (i32, i32) {
    %c0_i32 = arith.constant 0 : i32
    %c0_i32_0 = arith.constant 0 : i32
    %c0_i32_1 = arith.constant 0 : i32
    return %c0_i32, %c0_i32_0 : i32, i32
  }
  func.func @transform_7(%arg0: i32, %arg1: i32) -> (i32, i32) {
    %c0_i32 = arith.constant 0 : i32
    %c0_i32_0 = arith.constant 0 : i32
    return %arg0, %c0_i32 : i32, i32
  }
}

</mosaic_0001>

<llo_original>
// kernel: position_wise_feed_forward.1
$region0: #{position_wise_feed_forward.1}
  #allocation0 [shape = 'u32[]', space=smem, size = 0x4, offset = 0x4, fixed_abs, tag = 'smem constant byte address 0x4 - core index']
  #allocation1 [shape = 'u32[144,128]{1,0:T(1,128)}', space=vmem, size = 0x12000, scoped, tag = 'internal scratch']
  #allocation2 [shape = 'bf16[128,32]{1,0:T(8,128)(2,1)}', space=vmem, size = 0x8000, scoped, tag = 'scratch operand']
  #allocation3 [shape = 'f32[128,32]{1,0:T(8,128)}', space=vmem, size = 0x10000, scoped, tag = 'scratch operand']
  %s0 = inlined_call_operand.vmem [shape: f32[128,32], index: 0, kind: input, shape index: {}]
  %s1 = inlined_call_operand.vmem [shape: f32[1,32], index: 1, kind: input, shape index: {}]
  %s2 = inlined_call_operand.vmem [shape: f32[1,32], index: 2, kind: input, shape index: {}]
  %s3 = inlined_call_operand.vmem [shape: bf16[32,64], index: 3, kind: input, shape index: {}]
  %s4 = inlined_call_operand.vmem [shape: f32[1,64], index: 4, kind: input, shape index: {}]
  %s5 = inlined_call_operand.vmem [shape: bf16[64,32], index: 5, kind: input, shape index: {}]
  %s6 = inlined_call_operand.vmem [shape: f32[1,32], index: 6, kind: input, shape index: {}]
  %s7 = inlined_call_operand.vmem [shape: f32[128,32], index: 7, kind: output, shape index: {}]
  %s8 = sld [smem:[#allocation0]]
  $region46: #{position_wise_feed_forward.1} parent=0
    _
  %s10 = ssub.s32 1, %s8
  %s11 = scalar_select 0, %s10, %s8
  // Predicated region
  $region2: #{position_wise_feed_forward.1} parent=0 // pred_check
    _
  $region3: #{position_wise_feed_forward.1} parent=0 // pred_check_branch
    %13 = sbr.rel (0) target = $region5
  $region4: #{position_wise_feed_forward.1} parent=0 // pred_region
    _
  $region5: #{position_wise_feed_forward.1} parent=0 // pred_fallthru
    _
  // Predicated region
  $region6: #{position_wise_feed_forward.1} parent=0 // pred_check
    _
  $region7: #{position_wise_feed_forward.1} parent=0 // pred_check_branch
    %15 = sbr.rel (0) target = $region9
  $region8: #{position_wise_feed_forward.1} parent=0 // pred_region
    _
  $region9: #{position_wise_feed_forward.1} parent=0 // pred_fallthru
    _
  // Predicated region
  $region10: #{position_wise_feed_forward.1} parent=0 // pred_check
    _
  $region11: #{position_wise_feed_forward.1} parent=0 // pred_check_branch
    %17 = sbr.rel (0) target = $region13
  $region12: #{position_wise_feed_forward.1} parent=0 // pred_region
    _
  $region13: #{position_wise_feed_forward.1} parent=0 // pred_fallthru
    _
  // Predicated region
  $region14: #{position_wise_feed_forward.1} parent=0 // pred_check
    _
  $region15: #{position_wise_feed_forward.1} parent=0 // pred_check_branch
    %19 = sbr.rel (0) target = $region17
  $region16: #{position_wise_feed_forward.1} parent=0 // pred_region
    _
  $region17: #{position_wise_feed_forward.1} parent=0 // pred_fallthru
    _
  // Predicated region
  $region18: #{position_wise_feed_forward.1} parent=0 // pred_check
    _
  $region19: #{position_wise_feed_forward.1} parent=0 // pred_check_branch
    %21 = sbr.rel (0) target = $region21
  $region20: #{position_wise_feed_forward.1} parent=0 // pred_region
    _
  $region21: #{position_wise_feed_forward.1} parent=0 // pred_fallthru
    _
  // Predicated region
  $region22: #{position_wise_feed_forward.1} parent=0 // pred_check
    _
  $region23: #{position_wise_feed_forward.1} parent=0 // pred_check_branch
    %23 = sbr.rel (0) target = $region25
  $region24: #{position_wise_feed_forward.1} parent=0 // pred_region
    _
  $region25: #{position_wise_feed_forward.1} parent=0 // pred_fallthru
    _
  // Predicated region
  $region26: #{position_wise_feed_forward.1} parent=0 // pred_check
    _
  $region27: #{position_wise_feed_forward.1} parent=0 // pred_check_branch
    %25 = sbr.rel (0) target = $region29
  $region28: #{position_wise_feed_forward.1} parent=0 // pred_region
    _
  $region29: #{position_wise_feed_forward.1} parent=0 // pred_fallthru
    _
  %p27 = scmp.eq.s32.totalorder 0, 0
  // Predicated region
  $region30: #{position_wise_feed_forward.1} parent=0 // pred_check
    %p28 = pneg %p27
  $region31: #{position_wise_feed_forward.1} parent=0 // pred_check_branch
    %30 = sbr.rel (%p28) target = $region33
  $region32: #{position_wise_feed_forward.1} parent=0 // pred_region
    %v31 = vld [vmem:[%s0] sm:$0xff]
    %v32 = vld [vmem:[%s0 + $0x8] sm:$0xff]
    %v33 = vld [vmem:[%s0 + $0x10] sm:$0xff]
    %v34 = vld [vmem:[%s0 + $0x18] sm:$0xff]
    %v35 = vld [vmem:[%s0 + $0x20] sm:$0xff]
    %v36 = vld [vmem:[%s0 + $0x28] sm:$0xff]
    %v37 = vld [vmem:[%s0 + $0x30] sm:$0xff]
    %v38 = vld [vmem:[%s0 + $0x38] sm:$0xff]
    %v39 = vld [vmem:[%s0 + $0x40] sm:$0xff]
    %v40 = vld [vmem:[%s0 + $0x48] sm:$0xff]
    %v41 = vld [vmem:[%s0 + $0x50] sm:$0xff]
    %v42 = vld [vmem:[%s0 + $0x58] sm:$0xff]
    %v43 = vld [vmem:[%s0 + $0x60] sm:$0xff]
    %v44 = vld [vmem:[%s0 + $0x68] sm:$0xff]
    %v45 = vld [vmem:[%s0 + $0x70] sm:$0xff]
    %v46 = vld [vmem:[%s0 + $0x78] sm:$0xff]
    %vm47 = vcmask 261120
    %v48 = vsel %vm47, %v31, 0.0
    %49 = vadd.xlane.f32.xlu0 %v48
    %v50 = vpop.xlane.xlu0 %49
    %v51 = vsel %vm47, %v32, 0.0
    %52 = vadd.xlane.f32.xlu0 %v51
    %v53 = vpop.xlane.xlu0 %52
    %v54 = vsel %vm47, %v33, 0.0
    %55 = vadd.xlane.f32.xlu0 %v54
    %v56 = vpop.xlane.xlu0 %55
    %v57 = vsel %vm47, %v34, 0.0
    %58 = vadd.xlane.f32.xlu0 %v57
    %v59 = vpop.xlane.xlu0 %58
    %v60 = vsel %vm47, %v35, 0.0
    %61 = vadd.xlane.f32.xlu0 %v60
    %v62 = vpop.xlane.xlu0 %61
    %v63 = vsel %vm47, %v36, 0.0
    %64 = vadd.xlane.f32.xlu0 %v63
    %v65 = vpop.xlane.xlu0 %64
    %v66 = vsel %vm47, %v37, 0.0
    %67 = vadd.xlane.f32.xlu0 %v66
    %v68 = vpop.xlane.xlu0 %67
    %v69 = vsel %vm47, %v38, 0.0
    %70 = vadd.xlane.f32.xlu0 %v69
    %v71 = vpop.xlane.xlu0 %70
    %v72 = vsel %vm47, %v39, 0.0
    %73 = vadd.xlane.f32.xlu0 %v72
    %v74 = vpop.xlane.xlu0 %73
    %v75 = vsel %vm47, %v40, 0.0
    %76 = vadd.xlane.f32.xlu0 %v75
    %v77 = vpop.xlane.xlu0 %76
    %v78 = vsel %vm47, %v41, 0.0
    %79 = vadd.xlane.f32.xlu0 %v78
    %v80 = vpop.xlane.xlu0 %79
    %v81 = vsel %vm47, %v42, 0.0
    %82 = vadd.xlane.f32.xlu0 %v81
    %v83 = vpop.xlane.xlu0 %82
    %v84 = vsel %vm47, %v43, 0.0
    %85 = vadd.xlane.f32.xlu0 %v84
    %v86 = vpop.xlane.xlu0 %85
    %v87 = vsel %vm47, %v44, 0.0
    %88 = vadd.xlane.f32.xlu0 %v87
    %v89 = vpop.xlane.xlu0 %88
    %v90 = vsel %vm47, %v45, 0.0
    %91 = vadd.xlane.f32.xlu0 %v90
    %v92 = vpop.xlane.xlu0 %91
    %v93 = vsel %vm47, %v46, 0.0
    %94 = vadd.xlane.f32.xlu0 %v93
    %v95 = vpop.xlane.xlu0 %94
    %v96 = vrcp.pop 32.0
    %v97 = vmul.f32 %v50, %v96
    %v98 = vmul.f32 %v53, %v96
    %v99 = vmul.f32 %v56, %v96
    %v100 = vmul.f32 %v59, %v96
    %v101 = vmul.f32 %v62, %v96
    %v102 = vmul.f32 %v65, %v96
    %v103 = vmul.f32 %v68, %v96
    %v104 = vmul.f32 %v71, %v96
    %v105 = vmul.f32 %v74, %v96
    %v106 = vmul.f32 %v77, %v96
    %v107 = vmul.f32 %v80, %v96
    %v108 = vmul.f32 %v83, %v96
    %v109 = vmul.f32 %v86, %v96
    %v110 = vmul.f32 %v89, %v96
    %v111 = vmul.f32 %v92, %v96
    %v112 = vmul.f32 %v95, %v96
    %v113 = vmul.f32 %v31, %v31
    %v114 = vmul.f32 %v32, %v32
    %v115 = vmul.f32 %v33, %v33
    %v116 = vmul.f32 %v34, %v34
    %v117 = vmul.f32 %v35, %v35
    %v118 = vmul.f32 %v36, %v36
    %v119 = vmul.f32 %v37, %v37
    %v120 = vmul.f32 %v38, %v38
    %v121 = vmul.f32 %v39, %v39
    %v122 = vmul.f32 %v40, %v40
    %v123 = vmul.f32 %v41, %v41
    %v124 = vmul.f32 %v42, %v42
    %v125 = vmul.f32 %v43, %v43
    %v126 = vmul.f32 %v44, %v44
    %v127 = vmul.f32 %v45, %v45
    %v128 = vmul.f32 %v46, %v46
    %v129 = vsel %vm47, %v113, 0.0
    %130 = vadd.xlane.f32.xlu0 %v129
    %v131 = vpop.xlane.xlu0 %130
    %v132 = vsel %vm47, %v114, 0.0
    %133 = vadd.xlane.f32.xlu0 %v132
    %v134 = vpop.xlane.xlu0 %133
    %v135 = vsel %vm47, %v115, 0.0
    %136 = vadd.xlane.f32.xlu0 %v135
    %v137 = vpop.xlane.xlu0 %136
    %v138 = vsel %vm47, %v116, 0.0
    %139 = vadd.xlane.f32.xlu0 %v138
    %v140 = vpop.xlane.xlu0 %139
    %v141 = vsel %vm47, %v117, 0.0
    %142 = vadd.xlane.f32.xlu0 %v141
    %v143 = vpop.xlane.xlu0 %142
    %v144 = vsel %vm47, %v118, 0.0
    %145 = vadd.xlane.f32.xlu0 %v144
    %v146 = vpop.xlane.xlu0 %145
    %v147 = vsel %vm47, %v119, 0.0
    %148 = vadd.xlane.f32.xlu0 %v147
    %v149 = vpop.xlane.xlu0 %148
    %v150 = vsel %vm47, %v120, 0.0
    %151 = vadd.xlane.f32.xlu0 %v150
    %v152 = vpop.xlane.xlu0 %151
    %v153 = vsel %vm47, %v121, 0.0
    %154 = vadd.xlane.f32.xlu0 %v153
    %v155 = vpop.xlane.xlu0 %154
    %v156 = vsel %vm47, %v122, 0.0
    %157 = vadd.xlane.f32.xlu0 %v156
    %v158 = vpop.xlane.xlu0 %157
    %v159 = vsel %vm47, %v123, 0.0
    %160 = vadd.xlane.f32.xlu0 %v159
    %v161 = vpop.xlane.xlu0 %160
    %v162 = vsel %vm47, %v124, 0.0
    %163 = vadd.xlane.f32.xlu0 %v162
    %v164 = vpop.xlane.xlu0 %163
    %v165 = vsel %vm47, %v125, 0.0
    %166 = vadd.xlane.f32.xlu0 %v165
    %v167 = vpop.xlane.xlu0 %166
    %v168 = vsel %vm47, %v126, 0.0
    %169 = vadd.xlane.f32.xlu0 %v168
    %v170 = vpop.xlane.xlu0 %169
    %v171 = vsel %vm47, %v127, 0.0
    %172 = vadd.xlane.f32.xlu0 %v171
    %v173 = vpop.xlane.xlu0 %172
    %v174 = vsel %vm47, %v128, 0.0
    %175 = vadd.xlane.f32.xlu0 %v174
    %v176 = vpop.xlane.xlu0 %175
    %v177 = vmul.f32 %v131, %v96
    %v178 = vmul.f32 %v134, %v96
    %v179 = vmul.f32 %v137, %v96
    %v180 = vmul.f32 %v140, %v96
    %v181 = vmul.f32 %v143, %v96
    %v182 = vmul.f32 %v146, %v96
    %v183 = vmul.f32 %v149, %v96
    %v184 = vmul.f32 %v152, %v96
    %v185 = vmul.f32 %v155, %v96
    %v186 = vmul.f32 %v158, %v96
    %v187 = vmul.f32 %v161, %v96
    %v188 = vmul.f32 %v164, %v96
    %v189 = vmul.f32 %v167, %v96
    %v190 = vmul.f32 %v170, %v96
    %v191 = vmul.f32 %v173, %v96
    %v192 = vmul.f32 %v176, %v96
    %v193 = vmul.f32 %v97, %v97
    %v194 = vmul.f32 %v98, %v98
    %v195 = vmul.f32 %v99, %v99
    %v196 = vmul.f32 %v100, %v100
    %v197 = vmul.f32 %v101, %v101
    %v198 = vmul.f32 %v102, %v102
    %v199 = vmul.f32 %v103, %v103
    %v200 = vmul.f32 %v104, %v104
    %v201 = vmul.f32 %v105, %v105
    %v202 = vmul.f32 %v106, %v106
    %v203 = vmul.f32 %v107, %v107
    %v204 = vmul.f32 %v108, %v108
    %v205 = vmul.f32 %v109, %v109
    %v206 = vmul.f32 %v110, %v110
    %v207 = vmul.f32 %v111, %v111
    %v208 = vmul.f32 %v112, %v112
    %v209 = vsub.f32 %v177, %v193
    %v210 = vsub.f32 %v178, %v194
    %v211 = vsub.f32 %v179, %v195
    %v212 = vsub.f32 %v180, %v196
    %v213 = vsub.f32 %v181, %v197
    %v214 = vsub.f32 %v182, %v198
    %v215 = vsub.f32 %v183, %v199
    %v216 = vsub.f32 %v184, %v200
    %v217 = vsub.f32 %v185, %v201
    %v218 = vsub.f32 %v186, %v202
    %v219 = vsub.f32 %v187, %v203
    %v220 = vsub.f32 %v188, %v204
    %v221 = vsub.f32 %v189, %v205
    %v222 = vsub.f32 %v190, %v206
    %v223 = vsub.f32 %v191, %v207
    %v224 = vsub.f32 %v192, %v208
    %v225 = vmax.f32 %v209, 0.0
    %v226 = vmax.f32 %v210, 0.0
    %v227 = vmax.f32 %v211, 0.0
    %v228 = vmax.f32 %v212, 0.0
    %v229 = vmax.f32 %v213, 0.0
    %v230 = vmax.f32 %v214, 0.0
    %v231 = vmax.f32 %v215, 0.0
    %v232 = vmax.f32 %v216, 0.0
    %v233 = vmax.f32 %v217, 0.0
    %v234 = vmax.f32 %v218, 0.0
    %v235 = vmax.f32 %v219, 0.0
    %v236 = vmax.f32 %v220, 0.0
    %v237 = vmax.f32 %v221, 0.0
    %v238 = vmax.f32 %v222, 0.0
    %v239 = vmax.f32 %v223, 0.0
    %v240 = vmax.f32 %v224, 0.0
    %v241 = vsub.f32 %v31, %v97
    %v242 = vsub.f32 %v32, %v98
    %v243 = vsub.f32 %v33, %v99
    %v244 = vsub.f32 %v34, %v100
    %v245 = vsub.f32 %v35, %v101
    %v246 = vsub.f32 %v36, %v102
    %v247 = vsub.f32 %v37, %v103
    %v248 = vsub.f32 %v38, %v104
    %v249 = vsub.f32 %v39, %v105
    %v250 = vsub.f32 %v40, %v106
    %v251 = vsub.f32 %v41, %v107
    %v252 = vsub.f32 %v42, %v108
    %v253 = vsub.f32 %v43, %v109
    %v254 = vsub.f32 %v44, %v110
    %v255 = vsub.f32 %v45, %v111
    %v256 = vsub.f32 %v46, %v112
    %v257 = vadd.f32 %v225, 1e-06
    %v258 = vadd.f32 %v226, 1e-06
    %v259 = vadd.f32 %v227, 1e-06
    %v260 = vadd.f32 %v228, 1e-06
    %v261 = vadd.f32 %v229, 1e-06
    %v262 = vadd.f32 %v230, 1e-06
    %v263 = vadd.f32 %v231, 1e-06
    %v264 = vadd.f32 %v232, 1e-06
    %v265 = vadd.f32 %v233, 1e-06
    %v266 = vadd.f32 %v234, 1e-06
    %v267 = vadd.f32 %v235, 1e-06
    %v268 = vadd.f32 %v236, 1e-06
    %v269 = vadd.f32 %v237, 1e-06
    %v270 = vadd.f32 %v238, 1e-06
    %v271 = vadd.f32 %v239, 1e-06
    %v272 = vadd.f32 %v240, 1e-06
    %v273 = vrsqrt.pop %v257
    %v274 = vrsqrt.pop %v258
    %v275 = vrsqrt.pop %v259
    %v276 = vrsqrt.pop %v260
    %v277 = vrsqrt.pop %v261
    %v278 = vrsqrt.pop %v262
    %v279 = vrsqrt.pop %v263
    %v280 = vrsqrt.pop %v264
    %v281 = vrsqrt.pop %v265
    %v282 = vrsqrt.pop %v266
    %v283 = vrsqrt.pop %v267
    %v284 = vrsqrt.pop %v268
    %v285 = vrsqrt.pop %v269
    %v286 = vrsqrt.pop %v270
    %v287 = vrsqrt.pop %v271
    %v288 = vrsqrt.pop %v272
    %v289 = vmul.f32 %v241, %v273
    %v290 = vmul.f32 %v242, %v274
    %v291 = vmul.f32 %v243, %v275
    %v292 = vmul.f32 %v244, %v276
    %v293 = vmul.f32 %v245, %v277
    %v294 = vmul.f32 %v246, %v278
    %v295 = vmul.f32 %v247, %v279
    %v296 = vmul.f32 %v248, %v280
    %v297 = vmul.f32 %v249, %v281
    %v298 = vmul.f32 %v250, %v282
    %v299 = vmul.f32 %v251, %v283
    %v300 = vmul.f32 %v252, %v284
    %v301 = vmul.f32 %v253, %v285
    %v302 = vmul.f32 %v254, %v286
    %v303 = vmul.f32 %v255, %v287
    %v304 = vmul.f32 %v256, %v288
    %v305 = vld [vmem:[%s1] sm:$0x1]
    %v307 = vlaneseq
    %v308 = vshrl.u32 %v307, 7
    %v309 = vsub.s32 0, %v308
    %v310 = vrot.slane %v305, %v309
    %v312 = vmul.f32 %v289, %v310
    %v313 = vmul.f32 %v290, %v310
    %v314 = vmul.f32 %v291, %v310
    %v315 = vmul.f32 %v292, %v310
    %v316 = vmul.f32 %v293, %v310
    %v317 = vmul.f32 %v294, %v310
    %v318 = vmul.f32 %v295, %v310
    %v319 = vmul.f32 %v296, %v310
    %v320 = vmul.f32 %v297, %v310
    %v321 = vmul.f32 %v298, %v310
    %v322 = vmul.f32 %v299, %v310
    %v323 = vmul.f32 %v300, %v310
    %v324 = vmul.f32 %v301, %v310
    %v325 = vmul.f32 %v302, %v310
    %v326 = vmul.f32 %v303, %v310
    %v327 = vmul.f32 %v304, %v310
    %v328 = vld [vmem:[%s2] sm:$0x1]
    %v330 = vlaneseq
    %v331 = vshrl.u32 %v330, 7
    %v332 = vsub.s32 0, %v331
    %v333 = vrot.slane %v328, %v332
    %v335 = vadd.f32 %v312, %v333
    %v336 = vadd.f32 %v313, %v333
    %v337 = vadd.f32 %v314, %v333
    %v338 = vadd.f32 %v315, %v333
    %v339 = vadd.f32 %v316, %v333
    %v340 = vadd.f32 %v317, %v333
    %v341 = vadd.f32 %v318, %v333
    %v342 = vadd.f32 %v319, %v333
    %v343 = vadd.f32 %v320, %v333
    %v344 = vadd.f32 %v321, %v333
    %v345 = vadd.f32 %v322, %v333
    %v346 = vadd.f32 %v323, %v333
    %v347 = vadd.f32 %v324, %v333
    %v348 = vadd.f32 %v325, %v333
    %v349 = vadd.f32 %v326, %v333
    %v350 = vadd.f32 %v327, %v333
    %v351 = vpack.c.bf16 %v336, %v335
    %v352 = vpack.c.bf16 %v338, %v337
    %v353 = vpack.c.bf16 %v340, %v339
    %v354 = vpack.c.bf16 %v342, %v341
    %v355 = vpack.c.bf16 %v344, %v343
    %v356 = vpack.c.bf16 %v346, %v345
    %v357 = vpack.c.bf16 %v348, %v347
    %v358 = vpack.c.bf16 %v350, %v349
    %v367 = vunpack.c.l.b16 %v351
    %v368 = vunpack.c.h.b16 %v351
    %v369 = vunpack.c.l.b16 %v352
    %v370 = vunpack.c.h.b16 %v352
    %v371 = vunpack.c.l.b16 %v353
    %v372 = vunpack.c.h.b16 %v353
    %v373 = vunpack.c.l.b16 %v354
    %v374 = vunpack.c.h.b16 %v354
    %v375 = vunpack.c.l.b16 %v355
    %v376 = vunpack.c.h.b16 %v355
    %v377 = vunpack.c.l.b16 %v356
    %v378 = vunpack.c.h.b16 %v356
    %v379 = vunpack.c.l.b16 %v357
    %v380 = vunpack.c.h.b16 %v357
    %v381 = vunpack.c.l.b16 %v358
    %v382 = vunpack.c.h.b16 %v358
    %v383 = vpack.c.b16 %v367, %v367
    %v384 = vpack.c.b16 %v368, %v368
    %v385 = vpack.c.b16 %v369, %v369
    %v386 = vpack.c.b16 %v370, %v370
    %v387 = vpack.c.b16 %v371, %v371
    %v388 = vpack.c.b16 %v372, %v372
    %v389 = vpack.c.b16 %v373, %v373
    %v390 = vpack.c.b16 %v374, %v374
    %v391 = vpack.c.b16 %v375, %v375
    %v392 = vpack.c.b16 %v376, %v376
    %v393 = vpack.c.b16 %v377, %v377
    %v394 = vpack.c.b16 %v378, %v378
    %v395 = vpack.c.b16 %v379, %v379
    %v396 = vpack.c.b16 %v380, %v380
    %v397 = vpack.c.b16 %v381, %v381
    %v398 = vpack.c.b16 %v382, %v382
    %vm415 = vcmask 257024
    %416 = vst.msk [vmem:[#allocation2] sm:$0xf] %vm415, %v383
    %417 = vst.msk [vmem:[#allocation2 + $0x4] sm:$0xf] %vm415, %v384
    %418 = vst.msk [vmem:[#allocation2 + $0x8] sm:$0xf] %vm415, %v385
    %419 = vst.msk [vmem:[#allocation2 + $0xc] sm:$0xf] %vm415, %v386
    %420 = vst.msk [vmem:[#allocation2 + $0x10] sm:$0xf] %vm415, %v387
    %421 = vst.msk [vmem:[#allocation2 + $0x14] sm:$0xf] %vm415, %v388
    %422 = vst.msk [vmem:[#allocation2 + $0x18] sm:$0xf] %vm415, %v389
    %423 = vst.msk [vmem:[#allocation2 + $0x1c] sm:$0xf] %vm415, %v390
    %424 = vst.msk [vmem:[#allocation2 + $0x20] sm:$0xf] %vm415, %v391
    %425 = vst.msk [vmem:[#allocation2 + $0x24] sm:$0xf] %vm415, %v392
    %426 = vst.msk [vmem:[#allocation2 + $0x28] sm:$0xf] %vm415, %v393
    %427 = vst.msk [vmem:[#allocation2 + $0x2c] sm:$0xf] %vm415, %v394
    %428 = vst.msk [vmem:[#allocation2 + $0x30] sm:$0xf] %vm415, %v395
    %429 = vst.msk [vmem:[#allocation2 + $0x34] sm:$0xf] %vm415, %v396
    %430 = vst.msk [vmem:[#allocation2 + $0x38] sm:$0xf] %vm415, %v397
    %431 = vst.msk [vmem:[#allocation2 + $0x3c] sm:$0xf] %vm415, %v398
    %432 = vst.msk [vmem:[#allocation3] sm:$0xff] %vm47, 0.0
    %433 = vst.msk [vmem:[#allocation3 + $0x8] sm:$0xff] %vm47, 0.0
    %434 = vst.msk [vmem:[#allocation3 + $0x10] sm:$0xff] %vm47, 0.0
    %435 = vst.msk [vmem:[#allocation3 + $0x18] sm:$0xff] %vm47, 0.0
    %436 = vst.msk [vmem:[#allocation3 + $0x20] sm:$0xff] %vm47, 0.0
    %437 = vst.msk [vmem:[#allocation3 + $0x28] sm:$0xff] %vm47, 0.0
    %438 = vst.msk [vmem:[#allocation3 + $0x30] sm:$0xff] %vm47, 0.0
    %439 = vst.msk [vmem:[#allocation3 + $0x38] sm:$0xff] %vm47, 0.0
    %440 = vst.msk [vmem:[#allocation3 + $0x40] sm:$0xff] %vm47, 0.0
    %441 = vst.msk [vmem:[#allocation3 + $0x48] sm:$0xff] %vm47, 0.0
    %442 = vst.msk [vmem:[#allocation3 + $0x50] sm:$0xff] %vm47, 0.0
    %443 = vst.msk [vmem:[#allocation3 + $0x58] sm:$0xff] %vm47, 0.0
    %444 = vst.msk [vmem:[#allocation3 + $0x60] sm:$0xff] %vm47, 0.0
    %445 = vst.msk [vmem:[#allocation3 + $0x68] sm:$0xff] %vm47, 0.0
    %446 = vst.msk [vmem:[#allocation3 + $0x70] sm:$0xff] %vm47, 0.0
    %447 = vst.msk [vmem:[#allocation3 + $0x78] sm:$0xff] %vm47, 0.0
  $region33: #{position_wise_feed_forward.1} parent=0 // pred_fallthru
    _
  %v448 = vld [vmem:[#allocation2] sm:$0xf]
  %v449 = vld [vmem:[#allocation2 + $0x4] sm:$0xf]
  %v450 = vld [vmem:[#allocation2 + $0x8] sm:$0xf]
  %v451 = vld [vmem:[#allocation2 + $0xc] sm:$0xf]
  %v452 = vld [vmem:[#allocation2 + $0x10] sm:$0xf]
  %v453 = vld [vmem:[#allocation2 + $0x14] sm:$0xf]
  %v454 = vld [vmem:[#allocation2 + $0x18] sm:$0xf]
  %v455 = vld [vmem:[#allocation2 + $0x1c] sm:$0xf]
  %v456 = vld [vmem:[#allocation2 + $0x20] sm:$0xf]
  %v457 = vld [vmem:[#allocation2 + $0x24] sm:$0xf]
  %v458 = vld [vmem:[#allocation2 + $0x28] sm:$0xf]
  %v459 = vld [vmem:[#allocation2 + $0x2c] sm:$0xf]
  %v460 = vld [vmem:[#allocation2 + $0x30] sm:$0xf]
  %v461 = vld [vmem:[#allocation2 + $0x34] sm:$0xf]
  %v462 = vld [vmem:[#allocation2 + $0x38] sm:$0xf]
  %v463 = vld [vmem:[#allocation2 + $0x3c] sm:$0xf]
  %v464 = vld [vmem:[%s3] sm:$0xf]
  %v465 = vld [vmem:[%s3 + $0x4] sm:$0xf]
  %v466 = vld [vmem:[%s3 + $0x8] sm:$0xf]
  %v467 = vld [vmem:[%s3 + $0xc] sm:$0xf]
  %v468 = vld [vmem:[%s4] sm:$0x1]
  %v470 = vlaneseq
  %v471 = vshrl.u32 %v470, 7
  %v472 = vsub.s32 0, %v471
  %v473 = vrot.slane %v468, %v472
  %v491 = vunpack.c.l.b16 %v448
  %v492 = vunpack.c.l.b16 %v449
  %v493 = vunpack.c.l.b16 %v450
  %v494 = vunpack.c.l.b16 %v451
  %v495 = vunpack.c.l.b16 %v452
  %v496 = vunpack.c.l.b16 %v453
  %v497 = vunpack.c.l.b16 %v454
  %v498 = vunpack.c.l.b16 %v455
  %v499 = vunpack.c.l.b16 %v456
  %v500 = vunpack.c.l.b16 %v457
  %v501 = vunpack.c.l.b16 %v458
  %v502 = vunpack.c.l.b16 %v459
  %v503 = vunpack.c.l.b16 %v460
  %v504 = vunpack.c.l.b16 %v461
  %v505 = vunpack.c.l.b16 %v462
  %v506 = vunpack.c.l.b16 %v463
  %v507 = vpack.c.b16 %v492, %v491
  %v508 = vpack.c.b16 %v494, %v493
  %v509 = vpack.c.b16 %v496, %v495
  %v510 = vpack.c.b16 %v498, %v497
  %v511 = vpack.c.b16 %v500, %v499
  %v512 = vpack.c.b16 %v502, %v501
  %v513 = vpack.c.b16 %v504, %v503
  %v514 = vpack.c.b16 %v506, %v505
  %v519 = vunpack.c.l.b16 %v464
  %v520 = vunpack.c.l.b16 %v465
  %v521 = vunpack.c.l.b16 %v466
  %v522 = vunpack.c.l.b16 %v467
  %v523 = vpack.c.b16 %v520, %v519
  %v524 = vpack.c.b16 %v522, %v521
  %vm527 = vcmask 261120
  %v529 = vsel %vm527, %v507, 0
  %v532 = vsel %vm527, %v508, 0
  %v535 = vsel %vm527, %v509, 0
  %v538 = vsel %vm527, %v510, 0
  %v541 = vsel %vm527, %v511, 0
  %v544 = vsel %vm527, %v512, 0
  %v547 = vsel %vm527, %v513, 0
  %v550 = vsel %vm527, %v514, 0
  %552 = vmatprep.subr.bf16.mxu0 0
  %553 = vmatpush1.bf16.msra.mxu0 0
  %554 = vmatprep.subr.bf16.mxu0 0
  %555 = vmatpush1.bf16.msra.mxu0 0
  %556 = vmatprep.subr.bf16.mxu0 0
  %557 = vmatpush1.bf16.msra.mxu0 0
  %558 = vmatprep.subr.bf16.mxu0 0
  %559 = vmatpush1.bf16.msra.mxu0 0
  %560 = vmatprep.subr.bf16.mxu0 0
  %561 = vmatpush1.bf16.msra.mxu0 0
  %562 = vmatprep.subr.bf16.mxu0 0
  %563 = vmatpush1.bf16.msra.mxu0 0
  %564 = vmatprep.subr.bf16.mxu0 0
  %565 = vmatpush1.bf16.msra.mxu0 %v524
  %566 = vmatprep.subr.bf16.mxu0 0
  %567 = vmatpush1.bf16.msra.mxu0 %v523
  %568 = vmatprep.subr.bf16.mxu0 0
  %569 = vmatpush2.bf16.msra.mxu0 0
  %570 = vmatprep.subr.bf16.mxu0 0
  %571 = vmatpush2.bf16.msra.mxu0 0
  %572 = vmatprep.subr.bf16.mxu0 0
  %573 = vmatpush2.bf16.msra.mxu0 0
  %574 = vmatprep.subr.bf16.mxu0 0
  %575 = vmatpush2.bf16.msra.mxu0 0
  %576 = vmatprep.subr.bf16.mxu0 0
  %577 = vmatpush2.bf16.msra.mxu0 0
  %578 = vmatprep.subr.bf16.mxu0 0
  %579 = vmatpush2.bf16.msra.mxu0 0
  %580 = vmatprep.subr.bf16.mxu0 0
  %581 = vmatpush2.bf16.msra.mxu0 0
  %582 = vmatprep.subr.bf16.mxu0 0
  %583 = vmatpush2.bf16.msra.mxu0 0
  %584 = vmatprep.mubr.bf16.mxu0 0
  %585 = vmatmul.mubr.bf16.gmra.mxu0 %v529
  %v586 = vpop.f32.mrf.mxu0
  %v587 = vadd.f32 %v473, %v586
  %v588 = vpop.f32.mrf.mxu0
  %v589 = vpop.f32.mrf.mxu0
  %v590 = vadd.f32 %v473, %v589
  %v591 = vpop.f32.mrf.mxu0
  %592 = vmatprep.mubr.bf16.mxu0 0
  %593 = vmatmul.mubr.bf16.gmra.mxu0 %v532
  %v594 = vpop.f32.mrf.mxu0
  %v595 = vadd.f32 %v473, %v594
  %v596 = vpop.f32.mrf.mxu0
  %v597 = vpop.f32.mrf.mxu0
  %v598 = vadd.f32 %v473, %v597
  %v599 = vpop.f32.mrf.mxu0
  %600 = vmatprep.mubr.bf16.mxu0 0
  %601 = vmatmul.mubr.bf16.gmra.mxu0 %v535
  %v602 = vpop.f32.mrf.mxu0
  %v603 = vadd.f32 %v473, %v602
  %v604 = vpop.f32.mrf.mxu0
  %v605 = vpop.f32.mrf.mxu0
  %v606 = vadd.f32 %v473, %v605
  %v607 = vpop.f32.mrf.mxu0
  %608 = vmatprep.mubr.bf16.mxu0 0
  %609 = vmatmul.mubr.bf16.gmra.mxu0 %v538
  %v610 = vpop.f32.mrf.mxu0
  %v611 = vadd.f32 %v473, %v610
  %v612 = vpop.f32.mrf.mxu0
  %v613 = vpop.f32.mrf.mxu0
  %v614 = vadd.f32 %v473, %v613
  %v615 = vpop.f32.mrf.mxu0
  %616 = vmatprep.mubr.bf16.mxu0 0
  %617 = vmatmul.mubr.bf16.gmra.mxu0 %v541
  %v618 = vpop.f32.mrf.mxu0
  %v619 = vadd.f32 %v473, %v618
  %v620 = vpop.f32.mrf.mxu0
  %v621 = vpop.f32.mrf.mxu0
  %v622 = vadd.f32 %v473, %v621
  %v623 = vpop.f32.mrf.mxu0
  %624 = vmatprep.mubr.bf16.mxu0 0
  %625 = vmatmul.mubr.bf16.gmra.mxu0 %v544
  %v626 = vpop.f32.mrf.mxu0
  %v627 = vadd.f32 %v473, %v626
  %v628 = vpop.f32.mrf.mxu0
  %v629 = vpop.f32.mrf.mxu0
  %v630 = vadd.f32 %v473, %v629
  %v631 = vpop.f32.mrf.mxu0
  %632 = vmatprep.mubr.bf16.mxu0 0
  %633 = vmatmul.mubr.bf16.gmra.mxu0 %v547
  %v634 = vpop.f32.mrf.mxu0
  %v635 = vadd.f32 %v473, %v634
  %v636 = vpop.f32.mrf.mxu0
  %v637 = vpop.f32.mrf.mxu0
  %v638 = vadd.f32 %v473, %v637
  %v639 = vpop.f32.mrf.mxu0
  %640 = vmatprep.mubr.bf16.mxu0 0
  %641 = vmatmul.mubr.bf16.gmra.mxu0 %v550
  %v642 = vpop.f32.mrf.mxu0
  %v643 = vadd.f32 %v473, %v642
  %v644 = vpop.f32.mrf.mxu0
  %v645 = vpop.f32.mrf.mxu0
  %v646 = vadd.f32 %v473, %v645
  %v647 = vpop.f32.mrf.mxu0
  %648 = vdwg.mxu0
  %v649 = vmul.f32 %v587, 0.5
  %v650 = vmul.f32 %v590, 0.5
  %v651 = vmul.f32 %v595, 0.5
  %v652 = vmul.f32 %v598, 0.5
  %v653 = vmul.f32 %v603, 0.5
  %v654 = vmul.f32 %v606, 0.5
  %v655 = vmul.f32 %v611, 0.5
  %v656 = vmul.f32 %v614, 0.5
  %v657 = vmul.f32 %v619, 0.5
  %v658 = vmul.f32 %v622, 0.5
  %v659 = vmul.f32 %v627, 0.5
  %v660 = vmul.f32 %v630, 0.5
  %v661 = vmul.f32 %v635, 0.5
  %v662 = vmul.f32 %v638, 0.5
  %v663 = vmul.f32 %v643, 0.5
  %v664 = vmul.f32 %v646, 0.5
  %v665 = vmul.f32 %v587, 0.70710677
  %v666 = vmul.f32 %v590, 0.70710677
  %v667 = vmul.f32 %v595, 0.70710677
  %v668 = vmul.f32 %v598, 0.70710677
  %v669 = vmul.f32 %v603, 0.70710677
  %v670 = vmul.f32 %v606, 0.70710677
  %v671 = vmul.f32 %v611, 0.70710677
  %v672 = vmul.f32 %v614, 0.70710677
  %v673 = vmul.f32 %v619, 0.70710677
  %v674 = vmul.f32 %v622, 0.70710677
  %v675 = vmul.f32 %v627, 0.70710677
  %v676 = vmul.f32 %v630, 0.70710677
  %v677 = vmul.f32 %v635, 0.70710677
  %v678 = vmul.f32 %v638, 0.70710677
  %v679 = vmul.f32 %v643, 0.70710677
  %v680 = vmul.f32 %v646, 0.70710677
  %v681 = verf.f32.pop %v665
  %v682 = verf.f32.pop %v666
  %v683 = verf.f32.pop %v667
  %v684 = verf.f32.pop %v668
  %v685 = verf.f32.pop %v669
  %v686 = verf.f32.pop %v670
  %v687 = verf.f32.pop %v671
  %v688 = verf.f32.pop %v672
  %v689 = verf.f32.pop %v673
  %v690 = verf.f32.pop %v674
  %v691 = verf.f32.pop %v675
  %v692 = verf.f32.pop %v676
  %v693 = verf.f32.pop %v677
  %v694 = verf.f32.pop %v678
  %v695 = verf.f32.pop %v679
  %v696 = verf.f32.pop %v680
  %v697 = vadd.f32 %v681, 1.0
  %v698 = vadd.f32 %v682, 1.0
  %v699 = vadd.f32 %v683, 1.0
  %v700 = vadd.f32 %v684, 1.0
  %v701 = vadd.f32 %v685, 1.0
  %v702 = vadd.f32 %v686, 1.0
  %v703 = vadd.f32 %v687, 1.0
  %v704 = vadd.f32 %v688, 1.0
  %v705 = vadd.f32 %v689, 1.0
  %v706 = vadd.f32 %v690, 1.0
  %v707 = vadd.f32 %v691, 1.0
  %v708 = vadd.f32 %v692, 1.0
  %v709 = vadd.f32 %v693, 1.0
  %v710 = vadd.f32 %v694, 1.0
  %v711 = vadd.f32 %v695, 1.0
  %v712 = vadd.f32 %v696, 1.0
  %v713 = vmul.f32 %v649, %v697
  %v714 = vmul.f32 %v650, %v698
  %v715 = vmul.f32 %v651, %v699
  %v716 = vmul.f32 %v652, %v700
  %v717 = vmul.f32 %v653, %v701
  %v718 = vmul.f32 %v654, %v702
  %v719 = vmul.f32 %v655, %v703
  %v720 = vmul.f32 %v656, %v704
  %v721 = vmul.f32 %v657, %v705
  %v722 = vmul.f32 %v658, %v706
  %v723 = vmul.f32 %v659, %v707
  %v724 = vmul.f32 %v660, %v708
  %v725 = vmul.f32 %v661, %v709
  %v726 = vmul.f32 %v662, %v710
  %v727 = vmul.f32 %v663, %v711
  %v728 = vmul.f32 %v664, %v712
  %v729 = vld [vmem:[#allocation3] sm:$0xff]
  %v730 = vld [vmem:[#allocation3 + $0x8] sm:$0xff]
  %v731 = vld [vmem:[#allocation3 + $0x10] sm:$0xff]
  %v732 = vld [vmem:[#allocation3 + $0x18] sm:$0xff]
  %v733 = vld [vmem:[#allocation3 + $0x20] sm:$0xff]
  %v734 = vld [vmem:[#allocation3 + $0x28] sm:$0xff]
  %v735 = vld [vmem:[#allocation3 + $0x30] sm:$0xff]
  %v736 = vld [vmem:[#allocation3 + $0x38] sm:$0xff]
  %v737 = vld [vmem:[#allocation3 + $0x40] sm:$0xff]
  %v738 = vld [vmem:[#allocation3 + $0x48] sm:$0xff]
  %v739 = vld [vmem:[#allocation3 + $0x50] sm:$0xff]
  %v740 = vld [vmem:[#allocation3 + $0x58] sm:$0xff]
  %v741 = vld [vmem:[#allocation3 + $0x60] sm:$0xff]
  %v742 = vld [vmem:[#allocation3 + $0x68] sm:$0xff]
  %v743 = vld [vmem:[#allocation3 + $0x70] sm:$0xff]
  %v744 = vld [vmem:[#allocation3 + $0x78] sm:$0xff]
  %v745 = vpack.c.bf16 %v714, %v713
  %v746 = vpack.c.bf16 %v716, %v715
  %v747 = vpack.c.bf16 %v718, %v717
  %v748 = vpack.c.bf16 %v720, %v719
  %v749 = vpack.c.bf16 %v722, %v721
  %v750 = vpack.c.bf16 %v724, %v723
  %v751 = vpack.c.bf16 %v726, %v725
  %v752 = vpack.c.bf16 %v728, %v727
  %v753 = vld [vmem:[%s5] sm:$0xf]
  %v754 = vld [vmem:[%s5 + $0x4] sm:$0xf]
  %v755 = vld [vmem:[%s5 + $0x8] sm:$0xf]
  %v756 = vld [vmem:[%s5 + $0xc] sm:$0xf]
  %v757 = vld [vmem:[%s5 + $0x10] sm:$0xf]
  %v758 = vld [vmem:[%s5 + $0x14] sm:$0xf]
  %v759 = vld [vmem:[%s5 + $0x18] sm:$0xf]
  %v760 = vld [vmem:[%s5 + $0x1c] sm:$0xf]
  %v769 = vunpack.c.l.b16 %v753
  %v770 = vunpack.c.l.b16 %v754
  %v771 = vunpack.c.l.b16 %v755
  %v772 = vunpack.c.l.b16 %v756
  %v773 = vunpack.c.l.b16 %v757
  %v774 = vunpack.c.l.b16 %v758
  %v775 = vunpack.c.l.b16 %v759
  %v776 = vunpack.c.l.b16 %v760
  %v777 = vpack.c.b16 %v770, %v769
  %v778 = vpack.c.b16 %v772, %v771
  %v779 = vpack.c.b16 %v774, %v773
  %v780 = vpack.c.b16 %v776, %v775
  %vm785 = vcmask 523264
  %v787 = vsel %vm785, %v745, 0
  %v790 = vsel %vm785, %v746, 0
  %v793 = vsel %vm785, %v747, 0
  %v796 = vsel %vm785, %v748, 0
  %v799 = vsel %vm785, %v749, 0
  %v802 = vsel %vm785, %v750, 0
  %v805 = vsel %vm785, %v751, 0
  %v808 = vsel %vm785, %v752, 0
  %810 = vmatprep.subr.bf16.mxu0 0
  %811 = vmatpush1.bf16.msra.mxu0 0
  %812 = vmatprep.subr.bf16.mxu0 0
  %813 = vmatpush1.bf16.msra.mxu0 0
  %814 = vmatprep.subr.bf16.mxu0 0
  %815 = vmatpush1.bf16.msra.mxu0 0
  %816 = vmatprep.subr.bf16.mxu0 0
  %817 = vmatpush1.bf16.msra.mxu0 0
  %818 = vmatprep.subr.bf16.mxu0 0
  %819 = vmatpush1.bf16.msra.mxu0 %v780
  %820 = vmatprep.subr.bf16.mxu0 0
  %821 = vmatpush1.bf16.msra.mxu0 %v779
  %822 = vmatprep.subr.bf16.mxu0 0
  %823 = vmatpush1.bf16.msra.mxu0 %v778
  %824 = vmatprep.subr.bf16.mxu0 0
  %825 = vmatpush1.bf16.msra.mxu0 %v777
  %826 = vmatprep.subr.bf16.mxu0 0
  %827 = vmatpush2.bf16.msra.mxu0 0
  %828 = vmatprep.subr.bf16.mxu0 0
  %829 = vmatpush2.bf16.msra.mxu0 0
  %830 = vmatprep.subr.bf16.mxu0 0
  %831 = vmatpush2.bf16.msra.mxu0 0
  %832 = vmatprep.subr.bf16.mxu0 0
  %833 = vmatpush2.bf16.msra.mxu0 0
  %834 = vmatprep.subr.bf16.mxu0 0
  %835 = vmatpush2.bf16.msra.mxu0 0
  %836 = vmatprep.subr.bf16.mxu0 0
  %837 = vmatpush2.bf16.msra.mxu0 0
  %838 = vmatprep.subr.bf16.mxu0 0
  %839 = vmatpush2.bf16.msra.mxu0 0
  %840 = vmatprep.subr.bf16.mxu0 0
  %841 = vmatpush2.bf16.msra.mxu0 0
  %842 = vmatprep.mubr.bf16.mxu0 0
  %843 = vmatmul.mubr.bf16.gmra.mxu0 %v787
  %v844 = vpop.f32.mrf.mxu0
  %v845 = vadd.f32 0.0, %v844
  %v846 = vpop.f32.mrf.mxu0
  %v847 = vpop.f32.mrf.mxu0
  %v848 = vadd.f32 0.0, %v847
  %v849 = vpop.f32.mrf.mxu0
  %850 = vmatprep.mubr.bf16.mxu0 0
  %851 = vmatmul.mubr.bf16.gmra.mxu0 %v790
  %v852 = vpop.f32.mrf.mxu0
  %v853 = vadd.f32 0.0, %v852
  %v854 = vpop.f32.mrf.mxu0
  %v855 = vpop.f32.mrf.mxu0
  %v856 = vadd.f32 0.0, %v855
  %v857 = vpop.f32.mrf.mxu0
  %858 = vmatprep.mubr.bf16.mxu0 0
  %859 = vmatmul.mubr.bf16.gmra.mxu0 %v793
  %v860 = vpop.f32.mrf.mxu0
  %v861 = vadd.f32 0.0, %v860
  %v862 = vpop.f32.mrf.mxu0
  %v863 = vpop.f32.mrf.mxu0
  %v864 = vadd.f32 0.0, %v863
  %v865 = vpop.f32.mrf.mxu0
  %866 = vmatprep.mubr.bf16.mxu0 0
  %867 = vmatmul.mubr.bf16.gmra.mxu0 %v796
  %v868 = vpop.f32.mrf.mxu0
  %v869 = vadd.f32 0.0, %v868
  %v870 = vpop.f32.mrf.mxu0
  %v871 = vpop.f32.mrf.mxu0
  %v872 = vadd.f32 0.0, %v871
  %v873 = vpop.f32.mrf.mxu0
  %874 = vmatprep.mubr.bf16.mxu0 0
  %875 = vmatmul.mubr.bf16.gmra.mxu0 %v799
  %v876 = vpop.f32.mrf.mxu0
  %v877 = vadd.f32 0.0, %v876
  %v878 = vpop.f32.mrf.mxu0
  %v879 = vpop.f32.mrf.mxu0
  %v880 = vadd.f32 0.0, %v879
  %v881 = vpop.f32.mrf.mxu0
  %882 = vmatprep.mubr.bf16.mxu0 0
  %883 = vmatmul.mubr.bf16.gmra.mxu0 %v802
  %v884 = vpop.f32.mrf.mxu0
  %v885 = vadd.f32 0.0, %v884
  %v886 = vpop.f32.mrf.mxu0
  %v887 = vpop.f32.mrf.mxu0
  %v888 = vadd.f32 0.0, %v887
  %v889 = vpop.f32.mrf.mxu0
  %890 = vmatprep.mubr.bf16.mxu0 0
  %891 = vmatmul.mubr.bf16.gmra.mxu0 %v805
  %v892 = vpop.f32.mrf.mxu0
  %v893 = vadd.f32 0.0, %v892
  %v894 = vpop.f32.mrf.mxu0
  %v895 = vpop.f32.mrf.mxu0
  %v896 = vadd.f32 0.0, %v895
  %v897 = vpop.f32.mrf.mxu0
  %898 = vmatprep.mubr.bf16.mxu0 0
  %899 = vmatmul.mubr.bf16.gmra.mxu0 %v808
  %v900 = vpop.f32.mrf.mxu0
  %v901 = vadd.f32 0.0, %v900
  %v902 = vpop.f32.mrf.mxu0
  %v903 = vpop.f32.mrf.mxu0
  %v904 = vadd.f32 0.0, %v903
  %v905 = vpop.f32.mrf.mxu0
  %906 = vdwg.mxu0
  %v907 = vadd.f32 %v729, %v845
  %v908 = vadd.f32 %v730, %v848
  %v909 = vadd.f32 %v731, %v853
  %v910 = vadd.f32 %v732, %v856
  %v911 = vadd.f32 %v733, %v861
  %v912 = vadd.f32 %v734, %v864
  %v913 = vadd.f32 %v735, %v869
  %v914 = vadd.f32 %v736, %v872
  %v915 = vadd.f32 %v737, %v877
  %v916 = vadd.f32 %v738, %v880
  %v917 = vadd.f32 %v739, %v885
  %v918 = vadd.f32 %v740, %v888
  %v919 = vadd.f32 %v741, %v893
  %v920 = vadd.f32 %v742, %v896
  %v921 = vadd.f32 %v743, %v901
  %v922 = vadd.f32 %v744, %v904
  %923 = vst.msk [vmem:[#allocation3] sm:$0xff] %vm527, %v907
  %924 = vst.msk [vmem:[#allocation3 + $0x8] sm:$0xff] %vm527, %v908
  %925 = vst.msk [vmem:[#allocation3 + $0x10] sm:$0xff] %vm527, %v909
  %926 = vst.msk [vmem:[#allocation3 + $0x18] sm:$0xff] %vm527, %v910
  %927 = vst.msk [vmem:[#allocation3 + $0x20] sm:$0xff] %vm527, %v911
  %928 = vst.msk [vmem:[#allocation3 + $0x28] sm:$0xff] %vm527, %v912
  %929 = vst.msk [vmem:[#allocation3 + $0x30] sm:$0xff] %vm527, %v913
  %930 = vst.msk [vmem:[#allocation3 + $0x38] sm:$0xff] %vm527, %v914
  %931 = vst.msk [vmem:[#allocation3 + $0x40] sm:$0xff] %vm527, %v915
  %932 = vst.msk [vmem:[#allocation3 + $0x48] sm:$0xff] %vm527, %v916
  %933 = vst.msk [vmem:[#allocation3 + $0x50] sm:$0xff] %vm527, %v917
  %934 = vst.msk [vmem:[#allocation3 + $0x58] sm:$0xff] %vm527, %v918
  %935 = vst.msk [vmem:[#allocation3 + $0x60] sm:$0xff] %vm527, %v919
  %936 = vst.msk [vmem:[#allocation3 + $0x68] sm:$0xff] %vm527, %v920
  %937 = vst.msk [vmem:[#allocation3 + $0x70] sm:$0xff] %vm527, %v921
  %938 = vst.msk [vmem:[#allocation3 + $0x78] sm:$0xff] %vm527, %v922
  // Predicated region
  $region34: #{position_wise_feed_forward.1} parent=0 // pred_check
    %p939 = pneg %p27
  $region35: #{position_wise_feed_forward.1} parent=0 // pred_check_branch
    %941 = sbr.rel (%p939) target = $region37
  $region36: #{position_wise_feed_forward.1} parent=0 // pred_region
    %v942 = vld [vmem:[#allocation3] sm:$0xff]
    %v943 = vld [vmem:[#allocation3 + $0x8] sm:$0xff]
    %v944 = vld [vmem:[#allocation3 + $0x10] sm:$0xff]
    %v945 = vld [vmem:[#allocation3 + $0x18] sm:$0xff]
    %v946 = vld [vmem:[#allocation3 + $0x20] sm:$0xff]
    %v947 = vld [vmem:[#allocation3 + $0x28] sm:$0xff]
    %v948 = vld [vmem:[#allocation3 + $0x30] sm:$0xff]
    %v949 = vld [vmem:[#allocation3 + $0x38] sm:$0xff]
    %v950 = vld [vmem:[#allocation3 + $0x40] sm:$0xff]
    %v951 = vld [vmem:[#allocation3 + $0x48] sm:$0xff]
    %v952 = vld [vmem:[#allocation3 + $0x50] sm:$0xff]
    %v953 = vld [vmem:[#allocation3 + $0x58] sm:$0xff]
    %v954 = vld [vmem:[#allocation3 + $0x60] sm:$0xff]
    %v955 = vld [vmem:[#allocation3 + $0x68] sm:$0xff]
    %v956 = vld [vmem:[#allocation3 + $0x70] sm:$0xff]
    %v957 = vld [vmem:[#allocation3 + $0x78] sm:$0xff]
    %v958 = vld [vmem:[%s6] sm:$0x1]
    %v960 = vlaneseq
    %v961 = vshrl.u32 %v960, 7
    %v962 = vsub.s32 0, %v961
    %v963 = vrot.slane %v958, %v962
    %v965 = vadd.f32 %v942, %v963
    %v966 = vadd.f32 %v943, %v963
    %v967 = vadd.f32 %v944, %v963
    %v968 = vadd.f32 %v945, %v963
    %v969 = vadd.f32 %v946, %v963
    %v970 = vadd.f32 %v947, %v963
    %v971 = vadd.f32 %v948, %v963
    %v972 = vadd.f32 %v949, %v963
    %v973 = vadd.f32 %v950, %v963
    %v974 = vadd.f32 %v951, %v963
    %v975 = vadd.f32 %v952, %v963
    %v976 = vadd.f32 %v953, %v963
    %v977 = vadd.f32 %v954, %v963
    %v978 = vadd.f32 %v955, %v963
    %v979 = vadd.f32 %v956, %v963
    %v980 = vadd.f32 %v957, %v963
    %v981 = vld [vmem:[%s0] sm:$0xff]
    %v982 = vld [vmem:[%s0 + $0x8] sm:$0xff]
    %v983 = vld [vmem:[%s0 + $0x10] sm:$0xff]
    %v984 = vld [vmem:[%s0 + $0x18] sm:$0xff]
    %v985 = vld [vmem:[%s0 + $0x20] sm:$0xff]
    %v986 = vld [vmem:[%s0 + $0x28] sm:$0xff]
    %v987 = vld [vmem:[%s0 + $0x30] sm:$0xff]
    %v988 = vld [vmem:[%s0 + $0x38] sm:$0xff]
    %v989 = vld [vmem:[%s0 + $0x40] sm:$0xff]
    %v990 = vld [vmem:[%s0 + $0x48] sm:$0xff]
    %v991 = vld [vmem:[%s0 + $0x50] sm:$0xff]
    %v992 = vld [vmem:[%s0 + $0x58] sm:$0xff]
    %v993 = vld [vmem:[%s0 + $0x60] sm:$0xff]
    %v994 = vld [vmem:[%s0 + $0x68] sm:$0xff]
    %v995 = vld [vmem:[%s0 + $0x70] sm:$0xff]
    %v996 = vld [vmem:[%s0 + $0x78] sm:$0xff]
    %v997 = vadd.f32 %v965, %v981
    %v998 = vadd.f32 %v966, %v982
    %v999 = vadd.f32 %v967, %v983
    %v1000 = vadd.f32 %v968, %v984
    %v1001 = vadd.f32 %v969, %v985
    %v1002 = vadd.f32 %v970, %v986
    %v1003 = vadd.f32 %v971, %v987
    %v1004 = vadd.f32 %v972, %v988
    %v1005 = vadd.f32 %v973, %v989
    %v1006 = vadd.f32 %v974, %v990
    %v1007 = vadd.f32 %v975, %v991
    %v1008 = vadd.f32 %v976, %v992
    %v1009 = vadd.f32 %v977, %v993
    %v1010 = vadd.f32 %v978, %v994
    %v1011 = vadd.f32 %v979, %v995
    %v1012 = vadd.f32 %v980, %v996
    %1013 = vst.msk [vmem:[%s7] sm:$0xff] %vm527, %v997
    %1014 = vst.msk [vmem:[%s7 + $0x8] sm:$0xff] %vm527, %v998
    %1015 = vst.msk [vmem:[%s7 + $0x10] sm:$0xff] %vm527, %v999
    %1016 = vst.msk [vmem:[%s7 + $0x18] sm:$0xff] %vm527, %v1000
    %1017 = vst.msk [vmem:[%s7 + $0x20] sm:$0xff] %vm527, %v1001
    %1018 = vst.msk [vmem:[%s7 + $0x28] sm:$0xff] %vm527, %v1002
    %1019 = vst.msk [vmem:[%s7 + $0x30] sm:$0xff] %vm527, %v1003
    %1020 = vst.msk [vmem:[%s7 + $0x38] sm:$0xff] %vm527, %v1004
    %1021 = vst.msk [vmem:[%s7 + $0x40] sm:$0xff] %vm527, %v1005
    %1022 = vst.msk [vmem:[%s7 + $0x48] sm:$0xff] %vm527, %v1006
    %1023 = vst.msk [vmem:[%s7 + $0x50] sm:$0xff] %vm527, %v1007
    %1024 = vst.msk [vmem:[%s7 + $0x58] sm:$0xff] %vm527, %v1008
    %1025 = vst.msk [vmem:[%s7 + $0x60] sm:$0xff] %vm527, %v1009
    %1026 = vst.msk [vmem:[%s7 + $0x68] sm:$0xff] %vm527, %v1010
    %1027 = vst.msk [vmem:[%s7 + $0x70] sm:$0xff] %vm527, %v1011
    %1028 = vst.msk [vmem:[%s7 + $0x78] sm:$0xff] %vm527, %v1012
  $region37: #{position_wise_feed_forward.1} parent=0 // pred_fallthru
    _
  // Predicated region
  $region38: #{position_wise_feed_forward.1} parent=0 // pred_check
    _
  $region39: #{position_wise_feed_forward.1} parent=0 // pred_check_branch
    %1030 = sbr.rel (0) target = $region41
  $region40: #{position_wise_feed_forward.1} parent=0 // pred_region
    _
  $region41: #{position_wise_feed_forward.1} parent=0 // pred_fallthru
    _
  // Predicated region
  $region42: #{position_wise_feed_forward.1} parent=0 // pred_check
    _
  $region43: #{position_wise_feed_forward.1} parent=0 // pred_check_branch
    %1032 = sbr.rel (0) target = $region45
  $region44: #{position_wise_feed_forward.1} parent=0 // pred_region
    _
  $region45: #{position_wise_feed_forward.1} parent=0 // pred_fallthru
    _

</llo_original>
